<compile_context>
chip_gen: v5e
topology: v5e:2x2
jax: 0.10.0
libtpu: 0.0.40
codegen_flags: <defaults>
</compile_context>

<pallas_src>
import jax
import jax.numpy as jnp
from jax.experimental import pallas as pl
from jax.experimental.pallas import tpu as pltpu


def _mlp_kernel(x_ref, w1_ref, b1_ref, w2_ref, b2_ref, o_ref):
    # In-kernel cast of the activations (free on the VPU; identity when the
    # compute dtype is f32) — avoids a separate memory-bound astype op in XLA.
    x = x_ref[...].astype(w1_ref.dtype)
    # Layer 1: (tile_n, F_in) @ (F_in, H_pad) on the MXU, f32 accumulation.
    h = jnp.dot(x, w1_ref[...], preferred_element_type=jnp.float32)
    # Bias + ReLU stay in f32 on the VPU (correct & fast on all generations).
    h = jnp.maximum(h + b1_ref[...], 0.0)
    # Cast hidden activations to the compute dtype so the second matmul also
    # runs at MXU bf16 rate on the bf16 path (identity for f32).
    h = h.astype(w2_ref.dtype)
    # Layer 2: (tile_n, H_pad) @ (H_pad, F_out), f32 accumulation + bias.
    o = jnp.dot(h, w2_ref[...], preferred_element_type=jnp.float32)
    o_ref[...] = (o + b2_ref[...]).astype(o_ref.dtype)


def _round_up(x, m):
    return ((x + m - 1) // m) * m


def net_forward(features, w1, b1, w2, b2, *, tile_n=1024,
                compute_dtype=jnp.bfloat16, out_dtype=jnp.float32,
                min_grid_steps=2):
    """Pallas implementation of NET.forward: backbone MLP applied to features.

    features: (N, F_in); w1: (F_in, H); b1: (H,); w2: (H, F_out); b2: (F_out,)
    Returns (N, F_out) in `out_dtype`.

    compute_dtype=bf16 (default): bf16 weights/activations on the MXU with f32
    accumulation and f32 bias/ReLU epilogue (expected small precision loss).
    compute_dtype=f32: bit-for-bit reference path.
    """
    n, f_in = features.shape
    h_dim = w1.shape[1]
    f_out = w2.shape[1]

    # --- weight/bias prep (tiny arrays; one-time, negligible HBM traffic) ---
    # Zero-pad the hidden dim to a multiple of 128 so the hidden activation is
    # lane-dense and the second matmul contracts over a lane-aligned K.
    # Padded hidden columns are relu(x @ 0 + 0) = 0 and multiply zero rows of
    # w2, so the result is unchanged.
    h_pad = _round_up(h_dim, 128)
    w1c, b1c, w2c = w1, b1, w2
    if h_pad != h_dim:
        w1c = jnp.pad(w1, ((0, 0), (0, h_pad - h_dim)))
        b1c = jnp.pad(b1, (0, h_pad - h_dim))
        w2c = jnp.pad(w2, ((0, h_pad - h_dim), (0, 0)))
    w1c = w1c.astype(compute_dtype)
    w2c = w2c.astype(compute_dtype)
    # Biases stay f32 (added to the f32 accumulators), shaped (1, dim) so they
    # broadcast along the sublane (row) axis.
    b1_2d = b1c.reshape(1, h_pad).astype(jnp.float32)
    b2_2d = b2.reshape(1, f_out).astype(jnp.float32)

    # --- tile selection ---
    # Big tiles amortize the ~0.35 us per-grid-step pipeline overhead, but keep
    # at least `min_grid_steps` steps so the "parallel" batch axis can shard
    # across both TensorCores on v7x.  Sublane-align the tile to 8 rows.
    per_core = max(8, _round_up(pl.cdiv(n, min_grid_steps), 8))
    tile = min(_round_up(tile_n, 8), per_core)
    grid_n = pl.cdiv(n, tile)   # ragged final block handled by Pallas

    out = pl.pallas_call(
        _mlp_kernel,
        out_shape=jax.ShapeDtypeStruct((n, f_out), out_dtype),
        grid_spec=pltpu.PrefetchScalarGridSpec(
            num_scalar_prefetch=0,
            grid=(grid_n,),
            in_specs=[
                # Activations: one (tile, F_in) tile per grid step; the last
                # (possibly partial) block is masked by Pallas.
                pl.BlockSpec((tile, f_in), lambda i: (i, 0)),
                # Weights / biases: constant index_map -> fetched from HBM
                # once, held VMEM-resident across every batch tile.
                pl.BlockSpec((f_in, h_pad), lambda i: (0, 0)),
                pl.BlockSpec((1, h_pad), lambda i: (0, 0)),
                pl.BlockSpec((h_pad, f_out), lambda i: (0, 0)),
                pl.BlockSpec((1, f_out), lambda i: (0, 0)),
            ],
            out_specs=pl.BlockSpec((tile, f_out), lambda i: (i, 0)),
        ),
        compiler_params=pltpu.CompilerParams(
            # Batch tiles are independent -> megacore sharding on v7x.
            dimension_semantics=("parallel",),
            # Tiles are tiny; keep well under the 64 MiB v7x physical VMEM.
            vmem_limit_bytes=32 * 1024 * 1024,
        ),
    )(features, w1c, b1_2d, w2c, b2_2d)

    return out


def _reference(features, w1, b1, w2, b2):
    hid = jnp.maximum(features @ w1 + b1, 0.0)
    return hid @ w2 + b2


if __name__ == "__main__":
    key = jax.random.PRNGKey(0)
    k_x, k_w1, k_b1, k_w2, k_b2 = jax.random.split(key, 5)

    # Shapes consistent with a GCGL molecular-property predictor backbone.
    N, F_IN, H, F_OUT = 512, 32, 64, 16

    x = jax.random.normal(k_x, (N, F_IN), dtype=jnp.float32)
    w1 = jax.random.normal(k_w1, (F_IN, H), dtype=jnp.float32) * 0.1
    b1 = jax.random.normal(k_b1, (H,), dtype=jnp.float32) * 0.01
    w2 = jax.random.normal(k_w2, (H, F_OUT), dtype=jnp.float32) * 0.1
    b2 = jax.random.normal(k_b2, (F_OUT,), dtype=jnp.float32) * 0.01

    ref = _reference(x, w1, b1, w2, b2)

    # f32 path: strict correctness check (N=512 -> 2 grid steps of 256 rows).
    out_f32 = net_forward(x, w1, b1, w2, b2, compute_dtype=jnp.float32)
    jax.block_until_ready(out_f32)
    assert out_f32.shape == (N, F_OUT)
    assert jnp.allclose(out_f32, ref, atol=1e-5, rtol=1e-5), "f32 mismatch vs reference"

    # Ragged-N case (n % tile != 0): verifies the masked final block is
    # clipped correctly with no wrapper-side padding.
    n_ragged = 500
    out_ragged = net_forward(x[:n_ragged], w1, b1, w2, b2,
                             compute_dtype=jnp.float32, tile_n=192)
    jax.block_until_ready(out_ragged)
    assert out_ragged.shape == (n_ragged, F_OUT)
    assert jnp.allclose(out_ragged, ref[:n_ragged], atol=1e-5, rtol=1e-5), \
        "ragged-N mismatch vs reference"

    # Default bf16 compute path (f32 accumulation) for the v6e/v7x MXU:
    # looser tolerance, documented precision loss.
    out_bf16 = net_forward(x, w1, b1, w2, b2)
    jax.block_until_ready(out_bf16)
    assert out_bf16.shape == (N, F_OUT)
    assert jnp.allclose(out_bf16, ref, atol=3e-2, rtol=3e-2), "bf16 mismatch vs reference"

    # TODO(synk): the MAS regularization / fisher bookkeeping in observe() is
    # training-loop logic (autograd + Adam), not part of forward(); not ported.
    print("KERNEL_OK")
</pallas_src>

<mosaic_0001>
module attributes {stable_mosaic.version = 11 : i64} {
  func.func @_mlp_kernel(%arg0: i32, %arg1: memref<256x32xf32, #tpu.memory_space<vmem>>, %arg2: memref<32x128xf32, #tpu.memory_space<vmem>>, %arg3: memref<1x128xf32, #tpu.memory_space<vmem>>, %arg4: memref<128x16xf32, #tpu.memory_space<vmem>>, %arg5: memref<1x16xf32, #tpu.memory_space<vmem>>, %arg6: memref<256x16xf32, #tpu.memory_space<vmem>>) attributes {dimension_semantics = [#tpu.dimension_semantics<parallel>], iteration_bounds = array<i64: 2>, scalar_prefetch = 0 : i64, scratch_operands = 0 : i64, tpu.core_type = #tpu.core_type<tc>, window_params = [{transform_indices = @transform_0, window_bounds = array<i64: 256, 32>}, {pipeline_mode = #tpu.pipeline_mode<synchronous>, transform_indices = @transform_1, window_bounds = array<i64: 32, 128>}, {pipeline_mode = #tpu.pipeline_mode<synchronous>, transform_indices = @transform_2, window_bounds = array<i64: 1, 128>}, {pipeline_mode = #tpu.pipeline_mode<synchronous>, transform_indices = @transform_3, window_bounds = array<i64: 128, 16>}, {pipeline_mode = #tpu.pipeline_mode<synchronous>, transform_indices = @transform_4, window_bounds = array<i64: 1, 16>}, {transform_indices = @transform_5, window_bounds = array<i64: 256, 16>}]} {
    %c0 = arith.constant 0 : index
    %c0_0 = arith.constant 0 : index
    %0 = vector.load %arg1[%c0, %c0_0] : memref<256x32xf32, #tpu.memory_space<vmem>>, vector<256x32xf32>
    %c0_1 = arith.constant 0 : index
    %c0_2 = arith.constant 0 : index
    %1 = vector.load %arg2[%c0_1, %c0_2] : memref<32x128xf32, #tpu.memory_space<vmem>>, vector<32x128xf32>
    %cst = arith.constant dense<0.000000e+00> : vector<256x128xf32>
    %2 = tpu.matmul %0, %1, %cst {dimension_numbers = #tpu.dot_dimension_numbers<[1], [0], [0], [1], [0, 0, 1, 1], [], []>} : vector<256x32xf32>, vector<32x128xf32>, vector<256x128xf32> -> vector<256x128xf32>
    %c0_3 = arith.constant 0 : index
    %c0_4 = arith.constant 0 : index
    %3 = vector.load %arg3[%c0_3, %c0_4] : memref<1x128xf32, #tpu.memory_space<vmem>>, vector<1x128xf32>
    %4 = vector.broadcast %3 : vector<1x128xf32> to vector<256x128xf32>
    %5 = arith.addf %2, %4 : vector<256x128xf32>
    %cst_5 = arith.constant 0.000000e+00 : f32
    %6 = vector.broadcast %cst_5 : f32 to vector<256x128xf32>
    %7 = arith.maximumf %5, %6 : vector<256x128xf32>
    %c0_6 = arith.constant 0 : index
    %c0_7 = arith.constant 0 : index
    %8 = vector.load %arg4[%c0_6, %c0_7] : memref<128x16xf32, #tpu.memory_space<vmem>>, vector<128x16xf32>
    %cst_8 = arith.constant dense<0.000000e+00> : vector<256x16xf32>
    %9 = tpu.matmul %7, %8, %cst_8 {dimension_numbers = #tpu.dot_dimension_numbers<[1], [0], [0], [1], [0, 0, 1, 1], [], []>} : vector<256x128xf32>, vector<128x16xf32>, vector<256x16xf32> -> vector<256x16xf32>
    %c0_9 = arith.constant 0 : index
    %c0_10 = arith.constant 0 : index
    %10 = vector.load %arg5[%c0_9, %c0_10] : memref<1x16xf32, #tpu.memory_space<vmem>>, vector<1x16xf32>
    %11 = vector.broadcast %10 : vector<1x16xf32> to vector<256x16xf32>
    %12 = arith.addf %9, %11 : vector<256x16xf32>
    %c0_11 = arith.constant 0 : index
    %c0_12 = arith.constant 0 : index
    %13 = vector.load %arg6[%c0_11, %c0_12] : memref<256x16xf32, #tpu.memory_space<vmem>>, vector<256x16xf32>
    tpu.vector_store %arg6[%c0_11, %c0_12], %12 {strides = array<i32>} : memref<256x16xf32, #tpu.memory_space<vmem>>, vector<256x16xf32>,
    return
  }
  func.func @transform_0(%arg0: i32) -> (i32, i32) {
    %c0_i32 = arith.constant 0 : i32
    %c0_i32_0 = arith.constant 0 : i32
    return %arg0, %c0_i32 : i32, i32
  }
  func.func @transform_1(%arg0: i32) -> (i32, i32) {
    %c0_i32 = arith.constant 0 : i32
    %c0_i32_0 = arith.constant 0 : i32
    %c0_i32_1 = arith.constant 0 : i32
    return %c0_i32, %c0_i32_0 : i32, i32
  }
  func.func @transform_2(%arg0: i32) -> (i32, i32) {
    %c0_i32 = arith.constant 0 : i32
    %c0_i32_0 = arith.constant 0 : i32
    %c0_i32_1 = arith.constant 0 : i32
    return %c0_i32, %c0_i32_0 : i32, i32
  }
  func.func @transform_3(%arg0: i32) -> (i32, i32) {
    %c0_i32 = arith.constant 0 : i32
    %c0_i32_0 = arith.constant 0 : i32
    %c0_i32_1 = arith.constant 0 : i32
    return %c0_i32, %c0_i32_0 : i32, i32
  }
  func.func @transform_4(%arg0: i32) -> (i32, i32) {
    %c0_i32 = arith.constant 0 : i32
    %c0_i32_0 = arith.constant 0 : i32
    %c0_i32_1 = arith.constant 0 : i32
    return %c0_i32, %c0_i32_0 : i32, i32
  }
  func.func @transform_5(%arg0: i32) -> (i32, i32) {
    %c0_i32 = arith.constant 0 : i32
    %c0_i32_0 = arith.constant 0 : i32
    return %arg0, %c0_i32 : i32, i32
  }
}

</mosaic_0001>

<llo_original>
// kernel: tpu_custom_call.1
$region0: #{tpu_custom_call.1}
  #allocation0 [shape = 'u32[]', space=smem, size = 0x4, offset = 0x4, fixed_abs, tag = 'smem constant byte address 0x4 - core index']
  #allocation1 [shape = 'u32[72,128]{1,0:T(1,128)}', space=vmem, size = 0x9000, scoped, tag = 'internal scratch']
  %s0 = inlined_call_operand.vmem [shape: f32[512,32], index: 0, kind: input, shape index: {}]
  %s1 = inlined_call_operand.vmem [shape: f32[32,128], index: 1, kind: input, shape index: {}]
  %s2 = inlined_call_operand.vmem [shape: f32[1,128], index: 2, kind: input, shape index: {}]
  %s3 = inlined_call_operand.vmem [shape: f32[128,16], index: 3, kind: input, shape index: {}]
  %s4 = inlined_call_operand.vmem [shape: f32[1,16], index: 4, kind: input, shape index: {}]
  %s5 = inlined_call_operand.vmem [shape: f32[512,16], index: 5, kind: output, shape index: {}]
  %s6 = sld [smem:[#allocation0]]
  $region53: #{tpu_custom_call.1} parent=0
    _
  %s8 = ssub.s32 1, %s6
  %s9 = scalar_select 0, %s8, %s6
  loop: start=0, step=1, limit=4
  $region2: #{tpu_custom_call.1} parent=0 // loop_pre_header
    _
  $region3: #{tpu_custom_call.1} parent=0 // loop_header
    %s11 = sphi 0, %s15
    %p12 = scmp.ge.s32.totalorder %s11, 4
    %s21 = sphi 0, %s23
    %s24 = sphi 0, %s21
    %s25 = sphi 0, %s24
    %s41 = sphi 0, %s25
    %s45 = sphi 0, %s45
    %s47 = sphi 0, %s45
    %s48 = sphi 0, %s47
    %s62 = sphi 0, %s48
    %s66 = sphi 0, %s66
    %s68 = sphi 0, %s66
    %s69 = sphi 0, %s68
    %s83 = sphi 0, %s69
    %s87 = sphi 0, %s87
    %s89 = sphi 0, %s87
    %s90 = sphi 0, %s89
    %s104 = sphi 0, %s90
    %s108 = sphi 0, %s108
    %s110 = sphi 0, %s108
    %s111 = sphi 0, %s110
    %s125 = sphi 0, %s111
    %s131 = sphi 0, %s133
    %s134 = sphi 0, %s131
    %s135 = sphi 0, %s134
    %s151 = sphi 0, %s135
  $region4: #{tpu_custom_call.1} parent=0 // loop_header_branch
    %14 = sbr.rel (%p12) target = $region8
  $region5: #{tpu_custom_call.1} parent=0 // loop_body
    %s16 = ssub.s32 %s11, 1
    %s17 = ssub.s32 %s11, 2
    %s18 = sadd.s32 %s11, 1
    %s19 = ssub.s32 %s11, %s18
    %p20 = scmp.eq.s32.totalorder %s19, 0
    %s22 = sadd.s32 %s21, 1
    %s23 = scalar_select %p20, %s21, %s22
    %p26 = pneg %p20
    %p27 = scmp.eq.s32.totalorder %s11, 1
    %p28 = por %p26, %p27
    %p29 = scmp.ne.s32.totalorder %s21, %s24
    %p30 = scmp.eq.s32.totalorder %s11, 0
    %p31 = por %p29, %p30
    %p32 = scmp.ne.s32.totalorder %s21, %s24
    %p33 = scmp.eq.s32.totalorder %s16, 1
    %p34 = por %p32, %p33
    %p35 = scmp.ne.s32.totalorder %s24, %s25
    %p36 = scmp.eq.s32.totalorder %s16, 0
    %p37 = por %p35, %p36
    %p38 = scmp.ne.s32.totalorder %s24, %s25
    %p39 = scmp.eq.s32.totalorder %s17, 1
    %p40 = por %p38, %p39
    %p42 = scmp.ne.s32.totalorder %s25, %s41
    %p43 = scmp.eq.s32.totalorder %s17, 0
    %p44 = por %p42, %p43
    %s46 = sadd.s32 %s45, 1
    %p49 = scmp.eq.s32.totalorder %s11, 1
    %p50 = scmp.ne.s32.totalorder %s45, %s47
    %p51 = scmp.eq.s32.totalorder %s11, 0
    %p52 = por %p50, %p51
    %p53 = scmp.ne.s32.totalorder %s45, %s47
    %p54 = scmp.eq.s32.totalorder %s16, 1
    %p55 = por %p53, %p54
    %p56 = scmp.ne.s32.totalorder %s47, %s48
    %p57 = scmp.eq.s32.totalorder %s16, 0
    %p58 = por %p56, %p57
    %p59 = scmp.ne.s32.totalorder %s47, %s48
    %p60 = scmp.eq.s32.totalorder %s17, 1
    %p61 = por %p59, %p60
    %p63 = scmp.ne.s32.totalorder %s48, %s62
    %p64 = scmp.eq.s32.totalorder %s17, 0
    %p65 = por %p63, %p64
    %s67 = sadd.s32 %s66, 1
    %p70 = scmp.eq.s32.totalorder %s11, 1
    %p71 = scmp.ne.s32.totalorder %s66, %s68
    %p72 = scmp.eq.s32.totalorder %s11, 0
    %p73 = por %p71, %p72
    %p74 = scmp.ne.s32.totalorder %s66, %s68
    %p75 = scmp.eq.s32.totalorder %s16, 1
    %p76 = por %p74, %p75
    %p77 = scmp.ne.s32.totalorder %s68, %s69
    %p78 = scmp.eq.s32.totalorder %s16, 0
    %p79 = por %p77, %p78
    %p80 = scmp.ne.s32.totalorder %s68, %s69
    %p81 = scmp.eq.s32.totalorder %s17, 1
    %p82 = por %p80, %p81
    %p84 = scmp.ne.s32.totalorder %s69, %s83
    %p85 = scmp.eq.s32.totalorder %s17, 0
    %p86 = por %p84, %p85
    %s88 = sadd.s32 %s87, 1
    %p91 = scmp.eq.s32.totalorder %s11, 1
    %p92 = scmp.ne.s32.totalorder %s87, %s89
    %p93 = scmp.eq.s32.totalorder %s11, 0
    %p94 = por %p92, %p93
    %p95 = scmp.ne.s32.totalorder %s87, %s89
    %p96 = scmp.eq.s32.totalorder %s16, 1
    %p97 = por %p95, %p96
    %p98 = scmp.ne.s32.totalorder %s89, %s90
    %p99 = scmp.eq.s32.totalorder %s16, 0
    %p100 = por %p98, %p99
    %p101 = scmp.ne.s32.totalorder %s89, %s90
    %p102 = scmp.eq.s32.totalorder %s17, 1
    %p103 = por %p101, %p102
    %p105 = scmp.ne.s32.totalorder %s90, %s104
    %p106 = scmp.eq.s32.totalorder %s17, 0
    %p107 = por %p105, %p106
    %s109 = sadd.s32 %s108, 1
    %p112 = scmp.eq.s32.totalorder %s11, 1
    %p113 = scmp.ne.s32.totalorder %s108, %s110
    %p114 = scmp.eq.s32.totalorder %s11, 0
    %p115 = por %p113, %p114
    %p116 = scmp.ne.s32.totalorder %s108, %s110
    %p117 = scmp.eq.s32.totalorder %s16, 1
    %p118 = por %p116, %p117
    %p119 = scmp.ne.s32.totalorder %s110, %s111
    %p120 = scmp.eq.s32.totalorder %s16, 0
    %p121 = por %p119, %p120
    %p122 = scmp.ne.s32.totalorder %s110, %s111
    %p123 = scmp.eq.s32.totalorder %s17, 1
    %p124 = por %p122, %p123
    %p126 = scmp.ne.s32.totalorder %s111, %s125
    %p127 = scmp.eq.s32.totalorder %s17, 0
    %p128 = por %p126, %p127
    %s129 = ssub.s32 %s11, %s18
    %p130 = scmp.eq.s32.totalorder %s129, 0
    %s132 = sadd.s32 %s131, 1
    %s133 = scalar_select %p130, %s131, %s132
    %p136 = pneg %p130
    %p137 = scmp.eq.s32.totalorder %s11, 1
    %p138 = por %p136, %p137
    %p139 = scmp.ne.s32.totalorder %s131, %s134
    %p140 = scmp.eq.s32.totalorder %s11, 0
    %p141 = por %p139, %p140
    %p142 = scmp.ne.s32.totalorder %s131, %s134
    %p143 = scmp.eq.s32.totalorder %s16, 1
    %p144 = por %p142, %p143
    %p145 = scmp.ne.s32.totalorder %s134, %s135
    %p146 = scmp.eq.s32.totalorder %s16, 0
    %p147 = por %p145, %p146
    %p148 = scmp.ne.s32.totalorder %s134, %s135
    %p149 = scmp.eq.s32.totalorder %s17, 1
    %p150 = por %p148, %p149
    %p152 = scmp.ne.s32.totalorder %s135, %s151
    %p153 = scmp.eq.s32.totalorder %s17, 0
    %p154 = por %p152, %p153
    %p155 = scmp.le.s32.totalorder 1, %s11
    %p156 = scmp.lt.s32.totalorder %s11, 3
    %p157 = pnand %p155, %p156
    %p158 = pneg %p157
    // Predicated region
    $region9: #{tpu_custom_call.1} parent=5 // pred_check
      _
    $region10: #{tpu_custom_call.1} parent=5 // pred_check_branch
      %160 = sbr.rel (%p157) target = $region12
    $region11: #{tpu_custom_call.1} parent=5 // pred_region
      %s161 = ssub.s32 %s11, 1
      // Predicated region
      $region13: #{tpu_custom_call.1} parent=11 // pred_check
        %p162 = pneg %p58
      $region14: #{tpu_custom_call.1} parent=11 // pred_check_branch
        %164 = sbr.rel (%p162) target = $region16
      $region15: #{tpu_custom_call.1} parent=11 // pred_region
        _
      $region16: #{tpu_custom_call.1} parent=11 // pred_fallthru
        _
      // Predicated region
      $region17: #{tpu_custom_call.1} parent=11 // pred_check
        %p165 = pneg %p79
      $region18: #{tpu_custom_call.1} parent=11 // pred_check_branch
        %167 = sbr.rel (%p165) target = $region20
      $region19: #{tpu_custom_call.1} parent=11 // pred_region
        _
      $region20: #{tpu_custom_call.1} parent=11 // pred_fallthru
        _
      // Predicated region
      $region21: #{tpu_custom_call.1} parent=11 // pred_check
        %p168 = pneg %p100
      $region22: #{tpu_custom_call.1} parent=11 // pred_check_branch
        %170 = sbr.rel (%p168) target = $region24
      $region23: #{tpu_custom_call.1} parent=11 // pred_region
        _
      $region24: #{tpu_custom_call.1} parent=11 // pred_fallthru
        _
      // Predicated region
      $region25: #{tpu_custom_call.1} parent=11 // pred_check
        %p171 = pneg %p121
      $region26: #{tpu_custom_call.1} parent=11 // pred_check_branch
        %173 = sbr.rel (%p171) target = $region28
      $region27: #{tpu_custom_call.1} parent=11 // pred_region
        _
      $region28: #{tpu_custom_call.1} parent=11 // pred_fallthru
        _
    $region12: #{tpu_custom_call.1} parent=5 // pred_fallthru
      _
    %p174 = scmp.lt.s32.totalorder %s11, 2
    // Predicated region
    $region29: #{tpu_custom_call.1} parent=5 // pred_check
      %p175 = pneg %p174
    $region30: #{tpu_custom_call.1} parent=5 // pred_check_branch
      %177 = sbr.rel (%p175) target = $region32
    $region31: #{tpu_custom_call.1} parent=5 // pred_region
      // Predicated region
      $region33: #{tpu_custom_call.1} parent=31 // pred_check
        %p178 = pneg %p31
      $region34: #{tpu_custom_call.1} parent=31 // pred_check_branch
        %180 = sbr.rel (%p178) target = $region36
      $region35: #{tpu_custom_call.1} parent=31 // pred_region
        %s181 = smul.u32 32, %s11
        %p182 = scmp.lt.s32.totalorder %s181, 63
        %s183 = scalar_select %p182, %s181, 63
        %s184 = smul.addr %s183, 8
        %s185 = scalar_lea.vmem %s0, %s184
        %s186 = smul.u32 32, %s11
      $region36: #{tpu_custom_call.1} parent=31 // pred_fallthru
        _
    $region32: #{tpu_custom_call.1} parent=5 // pred_fallthru
      _
    %p187 = scmp.le.s32.totalorder 1, %s11
    %p188 = scmp.lt.s32.totalorder %s11, 3
    %p189 = pnand %p187, %p188
    %p190 = pneg %p189
    // Predicated region
    $region37: #{tpu_custom_call.1} parent=5 // pred_check
      _
    $region38: #{tpu_custom_call.1} parent=5 // pred_check_branch
      %192 = sbr.rel (%p189) target = $region40
    $region39: #{tpu_custom_call.1} parent=5 // pred_region
      %s193 = ssub.s32 %s11, 1
      %s194 = smul.u32 32, %s16
      %p195 = scmp.lt.s32.totalorder %s194, 63
      %s196 = scalar_select %p195, %s194, 63
      %s197 = smul.addr %s196, 8
      %s198 = scalar_lea.vmem %s0, %s197
      %p199 = pneg %p37
      %p200 = pneg %p34
      %p201 = pneg %p58
      %p202 = pneg %p55
      %p203 = pneg %p79
      %p204 = pneg %p76
      %p205 = pneg %p100
      %p206 = pneg %p97
      %p207 = pneg %p121
      %p208 = pneg %p118
      %p209 = pneg %p147
      %p210 = pneg %p144
      %s211 = smul.u32 32, %s16
      %p212 = scmp.lt.s32.totalorder %s211, 63
      %s213 = scalar_select %p212, %s211, 63
      %s214 = smul.addr %s213, 8
      %s215 = scalar_lea.vmem %s5, %s214
      %s216 = smul.u32 32, %s16
      %p217 = scmp.lt.s32.totalorder %s216, 63
      %s218 = scalar_select %p217, %s216, 63
      %s219 = smul.addr %s218, 8
      %s220 = scalar_lea.vmem %s0, %s219
      %s221 = smul.u32 32, %s16
      %s222 = smul.u32 32, %s16
      %p223 = scmp.lt.s32.totalorder %s222, 63
      %s224 = scalar_select %p223, %s222, 63
      %s225 = smul.addr %s224, 8
      %s226 = scalar_lea.vmem %s5, %s225
      %s227 = smul.u32 32, %s16
      %v228 = vld [vmem:[%s220] sm:$0xff]
      %v229 = vld [vmem:[%s220 + $0x8] sm:$0xff]
      %v230 = vld [vmem:[%s220 + $0x10] sm:$0xff]
      %v231 = vld [vmem:[%s220 + $0x18] sm:$0xff]
      %v232 = vld [vmem:[%s220 + $0x20] sm:$0xff]
      %v233 = vld [vmem:[%s220 + $0x28] sm:$0xff]
      %v234 = vld [vmem:[%s220 + $0x30] sm:$0xff]
      %v235 = vld [vmem:[%s220 + $0x38] sm:$0xff]
      %v236 = vld [vmem:[%s220 + $0x40] sm:$0xff]
      %v237 = vld [vmem:[%s220 + $0x48] sm:$0xff]
      %v238 = vld [vmem:[%s220 + $0x50] sm:$0xff]
      %v239 = vld [vmem:[%s220 + $0x58] sm:$0xff]
      %v240 = vld [vmem:[%s220 + $0x60] sm:$0xff]
      %v241 = vld [vmem:[%s220 + $0x68] sm:$0xff]
      %v242 = vld [vmem:[%s220 + $0x70] sm:$0xff]
      %v243 = vld [vmem:[%s220 + $0x78] sm:$0xff]
      %v244 = vld [vmem:[%s220 + $0x80] sm:$0xff]
      %v245 = vld [vmem:[%s220 + $0x88] sm:$0xff]
      %v246 = vld [vmem:[%s220 + $0x90] sm:$0xff]
      %v247 = vld [vmem:[%s220 + $0x98] sm:$0xff]
      %v248 = vld [vmem:[%s220 + $0xa0] sm:$0xff]
      %v249 = vld [vmem:[%s220 + $0xa8] sm:$0xff]
      %v250 = vld [vmem:[%s220 + $0xb0] sm:$0xff]
      %v251 = vld [vmem:[%s220 + $0xb8] sm:$0xff]
      %v252 = vld [vmem:[%s220 + $0xc0] sm:$0xff]
      %v253 = vld [vmem:[%s220 + $0xc8] sm:$0xff]
      %v254 = vld [vmem:[%s220 + $0xd0] sm:$0xff]
      %v255 = vld [vmem:[%s220 + $0xd8] sm:$0xff]
      %v256 = vld [vmem:[%s220 + $0xe0] sm:$0xff]
      %v257 = vld [vmem:[%s220 + $0xe8] sm:$0xff]
      %v258 = vld [vmem:[%s220 + $0xf0] sm:$0xff]
      %v259 = vld [vmem:[%s220 + $0xf8] sm:$0xff]
      %v260 = vld [vmem:[%s1] sm:$0xff]
      %v261 = vld [vmem:[%s1 + $0x8] sm:$0xff]
      %v262 = vld [vmem:[%s1 + $0x10] sm:$0xff]
      %v263 = vld [vmem:[%s1 + $0x18] sm:$0xff]
      %v264 = vld [vmem:[%s2] sm:$0x1]
      %v266 = vperm.slane %v264, 0
      %vm268 = vcmask 261120
      %v270 = vsel %vm268, %v228, 0
      %v273 = vsel %vm268, %v229, 0
      %v276 = vsel %vm268, %v230, 0
      %v279 = vsel %vm268, %v231, 0
      %v282 = vsel %vm268, %v232, 0
      %v285 = vsel %vm268, %v233, 0
      %v288 = vsel %vm268, %v234, 0
      %v291 = vsel %vm268, %v235, 0
      %v294 = vsel %vm268, %v236, 0
      %v297 = vsel %vm268, %v237, 0
      %v300 = vsel %vm268, %v238, 0
      %v303 = vsel %vm268, %v239, 0
      %v306 = vsel %vm268, %v240, 0
      %v309 = vsel %vm268, %v241, 0
      %v312 = vsel %vm268, %v242, 0
      %v315 = vsel %vm268, %v243, 0
      %v318 = vsel %vm268, %v244, 0
      %v321 = vsel %vm268, %v245, 0
      %v324 = vsel %vm268, %v246, 0
      %v327 = vsel %vm268, %v247, 0
      %v330 = vsel %vm268, %v248, 0
      %v333 = vsel %vm268, %v249, 0
      %v336 = vsel %vm268, %v250, 0
      %v339 = vsel %vm268, %v251, 0
      %v342 = vsel %vm268, %v252, 0
      %v345 = vsel %vm268, %v253, 0
      %v348 = vsel %vm268, %v254, 0
      %v351 = vsel %vm268, %v255, 0
      %v354 = vsel %vm268, %v256, 0
      %v357 = vsel %vm268, %v257, 0
      %v360 = vsel %vm268, %v258, 0
      %v363 = vsel %vm268, %v259, 0
      %365 = vmatpush.msra.mxu0 0.0
      %366 = vmatpush.msra.mxu0 0.0
      %367 = vmatpush.msra.mxu0 0.0
      %368 = vmatpush.msra.mxu0 0.0
      %369 = vmatpush.msra.mxu0 0.0
      %370 = vmatpush.msra.mxu0 0.0
      %371 = vmatpush.msra.mxu0 0.0
      %372 = vmatpush.msra.mxu0 0.0
      %373 = vmatpush.msra.mxu0 0.0
      %374 = vmatpush.msra.mxu0 0.0
      %375 = vmatpush.msra.mxu0 0.0
      %376 = vmatpush.msra.mxu0 0.0
      %377 = vmatpush.msra.mxu0 %v263
      %378 = vmatpush.msra.mxu0 %v262
      %379 = vmatpush.msra.mxu0 %v261
      %380 = vmatpush.msra.mxu0 %v260
      %381 = vmatmul.f32.gmra.mxu0 %v270
      %v382 = vpop.f32.mrf.mxu0
      %v383 = vadd.f32 %v266, %v382
      %384 = vmatmul.f32.gmra.mxu0 %v273
      %v385 = vpop.f32.mrf.mxu0
      %v386 = vadd.f32 %v266, %v385
      %387 = vmatmul.f32.gmra.mxu0 %v276
      %v388 = vpop.f32.mrf.mxu0
      %v389 = vadd.f32 %v266, %v388
      %390 = vmatmul.f32.gmra.mxu0 %v279
      %v391 = vpop.f32.mrf.mxu0
      %v392 = vadd.f32 %v266, %v391
      %393 = vmatmul.f32.gmra.mxu0 %v282
      %v394 = vpop.f32.mrf.mxu0
      %v395 = vadd.f32 %v266, %v394
      %396 = vmatmul.f32.gmra.mxu0 %v285
      %v397 = vpop.f32.mrf.mxu0
      %v398 = vadd.f32 %v266, %v397
      %399 = vmatmul.f32.gmra.mxu0 %v288
      %v400 = vpop.f32.mrf.mxu0
      %v401 = vadd.f32 %v266, %v400
      %402 = vmatmul.f32.gmra.mxu0 %v291
      %v403 = vpop.f32.mrf.mxu0
      %v404 = vadd.f32 %v266, %v403
      %405 = vmatmul.f32.gmra.mxu0 %v294
      %v406 = vpop.f32.mrf.mxu0
      %v407 = vadd.f32 %v266, %v406
      %408 = vmatmul.f32.gmra.mxu0 %v297
      %v409 = vpop.f32.mrf.mxu0
      %v410 = vadd.f32 %v266, %v409
      %411 = vmatmul.f32.gmra.mxu0 %v300
      %v412 = vpop.f32.mrf.mxu0
      %v413 = vadd.f32 %v266, %v412
      %414 = vmatmul.f32.gmra.mxu0 %v303
      %v415 = vpop.f32.mrf.mxu0
      %v416 = vadd.f32 %v266, %v415
      %417 = vmatmul.f32.gmra.mxu0 %v306
      %v418 = vpop.f32.mrf.mxu0
      %v419 = vadd.f32 %v266, %v418
      %420 = vmatmul.f32.gmra.mxu0 %v309
      %v421 = vpop.f32.mrf.mxu0
      %v422 = vadd.f32 %v266, %v421
      %423 = vmatmul.f32.gmra.mxu0 %v312
      %v424 = vpop.f32.mrf.mxu0
      %v425 = vadd.f32 %v266, %v424
      %426 = vmatmul.f32.gmra.mxu0 %v315
      %v427 = vpop.f32.mrf.mxu0
      %v428 = vadd.f32 %v266, %v427
      %429 = vmatmul.f32.gmra.mxu0 %v318
      %v430 = vpop.f32.mrf.mxu0
      %v431 = vadd.f32 %v266, %v430
      %432 = vmatmul.f32.gmra.mxu0 %v321
      %v433 = vpop.f32.mrf.mxu0
      %v434 = vadd.f32 %v266, %v433
      %435 = vmatmul.f32.gmra.mxu0 %v324
      %v436 = vpop.f32.mrf.mxu0
      %v437 = vadd.f32 %v266, %v436
      %438 = vmatmul.f32.gmra.mxu0 %v327
      %v439 = vpop.f32.mrf.mxu0
      %v440 = vadd.f32 %v266, %v439
      %441 = vmatmul.f32.gmra.mxu0 %v330
      %v442 = vpop.f32.mrf.mxu0
      %v443 = vadd.f32 %v266, %v442
      %444 = vmatmul.f32.gmra.mxu0 %v333
      %v445 = vpop.f32.mrf.mxu0
      %v446 = vadd.f32 %v266, %v445
      %447 = vmatmul.f32.gmra.mxu0 %v336
      %v448 = vpop.f32.mrf.mxu0
      %v449 = vadd.f32 %v266, %v448
      %450 = vmatmul.f32.gmra.mxu0 %v339
      %v451 = vpop.f32.mrf.mxu0
      %v452 = vadd.f32 %v266, %v451
      %453 = vmatmul.f32.gmra.mxu0 %v342
      %v454 = vpop.f32.mrf.mxu0
      %v455 = vadd.f32 %v266, %v454
      %456 = vmatmul.f32.gmra.mxu0 %v345
      %v457 = vpop.f32.mrf.mxu0
      %v458 = vadd.f32 %v266, %v457
      %459 = vmatmul.f32.gmra.mxu0 %v348
      %v460 = vpop.f32.mrf.mxu0
      %v461 = vadd.f32 %v266, %v460
      %462 = vmatmul.f32.gmra.mxu0 %v351
      %v463 = vpop.f32.mrf.mxu0
      %v464 = vadd.f32 %v266, %v463
      %465 = vmatmul.f32.gmra.mxu0 %v354
      %v466 = vpop.f32.mrf.mxu0
      %v467 = vadd.f32 %v266, %v466
      %468 = vmatmul.f32.gmra.mxu0 %v357
      %v469 = vpop.f32.mrf.mxu0
      %v470 = vadd.f32 %v266, %v469
      %471 = vmatmul.f32.gmra.mxu0 %v360
      %v472 = vpop.f32.mrf.mxu0
      %v473 = vadd.f32 %v266, %v472
      %474 = vmatmul.f32.gmra.mxu0 %v363
      %v475 = vpop.f32.mrf.mxu0
      %v476 = vadd.f32 %v266, %v475
      %477 = vdwg.mxu0
      %v478 = vmax.f32 %v383, 0.0
      %v479 = vmax.f32 %v386, 0.0
      %v480 = vmax.f32 %v389, 0.0
      %v481 = vmax.f32 %v392, 0.0
      %v482 = vmax.f32 %v395, 0.0
      %v483 = vmax.f32 %v398, 0.0
      %v484 = vmax.f32 %v401, 0.0
      %v485 = vmax.f32 %v404, 0.0
      %v486 = vmax.f32 %v407, 0.0
      %v487 = vmax.f32 %v410, 0.0
      %v488 = vmax.f32 %v413, 0.0
      %v489 = vmax.f32 %v416, 0.0
      %v490 = vmax.f32 %v419, 0.0
      %v491 = vmax.f32 %v422, 0.0
      %v492 = vmax.f32 %v425, 0.0
      %v493 = vmax.f32 %v428, 0.0
      %v494 = vmax.f32 %v431, 0.0
      %v495 = vmax.f32 %v434, 0.0
      %v496 = vmax.f32 %v437, 0.0
      %v497 = vmax.f32 %v440, 0.0
      %v498 = vmax.f32 %v443, 0.0
      %v499 = vmax.f32 %v446, 0.0
      %v500 = vmax.f32 %v449, 0.0
      %v501 = vmax.f32 %v452, 0.0
      %v502 = vmax.f32 %v455, 0.0
      %v503 = vmax.f32 %v458, 0.0
      %v504 = vmax.f32 %v461, 0.0
      %v505 = vmax.f32 %v464, 0.0
      %v506 = vmax.f32 %v467, 0.0
      %v507 = vmax.f32 %v470, 0.0
      %v508 = vmax.f32 %v473, 0.0
      %v509 = vmax.f32 %v476, 0.0
      %v510 = vld [vmem:[%s3] sm:$0xff]
      %v511 = vld [vmem:[%s3 + $0x8] sm:$0xff]
      %v512 = vld [vmem:[%s3 + $0x10] sm:$0xff]
      %v513 = vld [vmem:[%s3 + $0x18] sm:$0xff]
      %v514 = vld [vmem:[%s3 + $0x20] sm:$0xff]
      %v515 = vld [vmem:[%s3 + $0x28] sm:$0xff]
      %v516 = vld [vmem:[%s3 + $0x30] sm:$0xff]
      %v517 = vld [vmem:[%s3 + $0x38] sm:$0xff]
      %v518 = vld [vmem:[%s3 + $0x40] sm:$0xff]
      %v519 = vld [vmem:[%s3 + $0x48] sm:$0xff]
      %v520 = vld [vmem:[%s3 + $0x50] sm:$0xff]
      %v521 = vld [vmem:[%s3 + $0x58] sm:$0xff]
      %v522 = vld [vmem:[%s3 + $0x60] sm:$0xff]
      %v523 = vld [vmem:[%s3 + $0x68] sm:$0xff]
      %v524 = vld [vmem:[%s3 + $0x70] sm:$0xff]
      %v525 = vld [vmem:[%s3 + $0x78] sm:$0xff]
      %v526 = vld [vmem:[%s4] sm:$0x1]
      %v528 = vperm.slane %v526, 0
      %530 = vmatpush.msra.mxu0 %v525
      %531 = vmatpush.msra.mxu0 %v524
      %532 = vmatpush.msra.mxu0 %v523
      %533 = vmatpush.msra.mxu0 %v522
      %534 = vmatpush.msra.mxu0 %v521
      %535 = vmatpush.msra.mxu0 %v520
      %536 = vmatpush.msra.mxu0 %v519
      %537 = vmatpush.msra.mxu0 %v518
      %538 = vmatpush.msra.mxu0 %v517
      %539 = vmatpush.msra.mxu0 %v516
      %540 = vmatpush.msra.mxu0 %v515
      %541 = vmatpush.msra.mxu0 %v514
      %542 = vmatpush.msra.mxu0 %v513
      %543 = vmatpush.msra.mxu0 %v512
      %544 = vmatpush.msra.mxu0 %v511
      %545 = vmatpush.msra.mxu0 %v510
      %546 = vmatmul.f32.gmra.mxu0 %v478
      %v547 = vpop.f32.mrf.mxu0
      %v548 = vadd.f32 %v528, %v547
      %549 = vmatmul.f32.gmra.mxu0 %v479
      %v550 = vpop.f32.mrf.mxu0
      %v551 = vadd.f32 %v528, %v550
      %552 = vmatmul.f32.gmra.mxu0 %v480
      %v553 = vpop.f32.mrf.mxu0
      %v554 = vadd.f32 %v528, %v553
      %555 = vmatmul.f32.gmra.mxu0 %v481
      %v556 = vpop.f32.mrf.mxu0
      %v557 = vadd.f32 %v528, %v556
      %558 = vmatmul.f32.gmra.mxu0 %v482
      %v559 = vpop.f32.mrf.mxu0
      %v560 = vadd.f32 %v528, %v559
      %561 = vmatmul.f32.gmra.mxu0 %v483
      %v562 = vpop.f32.mrf.mxu0
      %v563 = vadd.f32 %v528, %v562
      %564 = vmatmul.f32.gmra.mxu0 %v484
      %v565 = vpop.f32.mrf.mxu0
      %v566 = vadd.f32 %v528, %v565
      %567 = vmatmul.f32.gmra.mxu0 %v485
      %v568 = vpop.f32.mrf.mxu0
      %v569 = vadd.f32 %v528, %v568
      %570 = vmatmul.f32.gmra.mxu0 %v486
      %v571 = vpop.f32.mrf.mxu0
      %v572 = vadd.f32 %v528, %v571
      %573 = vmatmul.f32.gmra.mxu0 %v487
      %v574 = vpop.f32.mrf.mxu0
      %v575 = vadd.f32 %v528, %v574
      %576 = vmatmul.f32.gmra.mxu0 %v488
      %v577 = vpop.f32.mrf.mxu0
      %v578 = vadd.f32 %v528, %v577
      %579 = vmatmul.f32.gmra.mxu0 %v489
      %v580 = vpop.f32.mrf.mxu0
      %v581 = vadd.f32 %v528, %v580
      %582 = vmatmul.f32.gmra.mxu0 %v490
      %v583 = vpop.f32.mrf.mxu0
      %v584 = vadd.f32 %v528, %v583
      %585 = vmatmul.f32.gmra.mxu0 %v491
      %v586 = vpop.f32.mrf.mxu0
      %v587 = vadd.f32 %v528, %v586
      %588 = vmatmul.f32.gmra.mxu0 %v492
      %v589 = vpop.f32.mrf.mxu0
      %v590 = vadd.f32 %v528, %v589
      %591 = vmatmul.f32.gmra.mxu0 %v493
      %v592 = vpop.f32.mrf.mxu0
      %v593 = vadd.f32 %v528, %v592
      %594 = vmatmul.f32.gmra.mxu0 %v494
      %v595 = vpop.f32.mrf.mxu0
      %v596 = vadd.f32 %v528, %v595
      %597 = vmatmul.f32.gmra.mxu0 %v495
      %v598 = vpop.f32.mrf.mxu0
      %v599 = vadd.f32 %v528, %v598
      %600 = vmatmul.f32.gmra.mxu0 %v496
      %v601 = vpop.f32.mrf.mxu0
      %v602 = vadd.f32 %v528, %v601
      %603 = vmatmul.f32.gmra.mxu0 %v497
      %v604 = vpop.f32.mrf.mxu0
      %v605 = vadd.f32 %v528, %v604
      %606 = vmatmul.f32.gmra.mxu0 %v498
      %v607 = vpop.f32.mrf.mxu0
      %v608 = vadd.f32 %v528, %v607
      %609 = vmatmul.f32.gmra.mxu0 %v499
      %v610 = vpop.f32.mrf.mxu0
      %v611 = vadd.f32 %v528, %v610
      %612 = vmatmul.f32.gmra.mxu0 %v500
      %v613 = vpop.f32.mrf.mxu0
      %v614 = vadd.f32 %v528, %v613
      %615 = vmatmul.f32.gmra.mxu0 %v501
      %v616 = vpop.f32.mrf.mxu0
      %v617 = vadd.f32 %v528, %v616
      %618 = vmatmul.f32.gmra.mxu0 %v502
      %v619 = vpop.f32.mrf.mxu0
      %v620 = vadd.f32 %v528, %v619
      %621 = vmatmul.f32.gmra.mxu0 %v503
      %v622 = vpop.f32.mrf.mxu0
      %v623 = vadd.f32 %v528, %v622
      %624 = vmatmul.f32.gmra.mxu0 %v504
      %v625 = vpop.f32.mrf.mxu0
      %v626 = vadd.f32 %v528, %v625
      %627 = vmatmul.f32.gmra.mxu0 %v505
      %v628 = vpop.f32.mrf.mxu0
      %v629 = vadd.f32 %v528, %v628
      %630 = vmatmul.f32.gmra.mxu0 %v506
      %v631 = vpop.f32.mrf.mxu0
      %v632 = vadd.f32 %v528, %v631
      %633 = vmatmul.f32.gmra.mxu0 %v507
      %v634 = vpop.f32.mrf.mxu0
      %v635 = vadd.f32 %v528, %v634
      %636 = vmatmul.f32.gmra.mxu0 %v508
      %v637 = vpop.f32.mrf.mxu0
      %v638 = vadd.f32 %v528, %v637
      %639 = vmatmul.f32.gmra.mxu0 %v509
      %v640 = vpop.f32.mrf.mxu0
      %v641 = vadd.f32 %v528, %v640
      %642 = vdwg.mxu0
      %vm643 = vcmask 130048
      %644 = vst.msk [vmem:[%s226] sm:$0xff] %vm643, %v548
      %645 = vst.msk [vmem:[%s226 + $0x8] sm:$0xff] %vm643, %v551
      %646 = vst.msk [vmem:[%s226 + $0x10] sm:$0xff] %vm643, %v554
      %647 = vst.msk [vmem:[%s226 + $0x18] sm:$0xff] %vm643, %v557
      %648 = vst.msk [vmem:[%s226 + $0x20] sm:$0xff] %vm643, %v560
      %649 = vst.msk [vmem:[%s226 + $0x28] sm:$0xff] %vm643, %v563
      %650 = vst.msk [vmem:[%s226 + $0x30] sm:$0xff] %vm643, %v566
      %651 = vst.msk [vmem:[%s226 + $0x38] sm:$0xff] %vm643, %v569
      %652 = vst.msk [vmem:[%s226 + $0x40] sm:$0xff] %vm643, %v572
      %653 = vst.msk [vmem:[%s226 + $0x48] sm:$0xff] %vm643, %v575
      %654 = vst.msk [vmem:[%s226 + $0x50] sm:$0xff] %vm643, %v578
      %655 = vst.msk [vmem:[%s226 + $0x58] sm:$0xff] %vm643, %v581
      %656 = vst.msk [vmem:[%s226 + $0x60] sm:$0xff] %vm643, %v584
      %657 = vst.msk [vmem:[%s226 + $0x68] sm:$0xff] %vm643, %v587
      %658 = vst.msk [vmem:[%s226 + $0x70] sm:$0xff] %vm643, %v590
      %659 = vst.msk [vmem:[%s226 + $0x78] sm:$0xff] %vm643, %v593
      %660 = vst.msk [vmem:[%s226 + $0x80] sm:$0xff] %vm643, %v596
      %661 = vst.msk [vmem:[%s226 + $0x88] sm:$0xff] %vm643, %v599
      %662 = vst.msk [vmem:[%s226 + $0x90] sm:$0xff] %vm643, %v602
      %663 = vst.msk [vmem:[%s226 + $0x98] sm:$0xff] %vm643, %v605
      %664 = vst.msk [vmem:[%s226 + $0xa0] sm:$0xff] %vm643, %v608
      %665 = vst.msk [vmem:[%s226 + $0xa8] sm:$0xff] %vm643, %v611
      %666 = vst.msk [vmem:[%s226 + $0xb0] sm:$0xff] %vm643, %v614
      %667 = vst.msk [vmem:[%s226 + $0xb8] sm:$0xff] %vm643, %v617
      %668 = vst.msk [vmem:[%s226 + $0xc0] sm:$0xff] %vm643, %v620
      %669 = vst.msk [vmem:[%s226 + $0xc8] sm:$0xff] %vm643, %v623
      %670 = vst.msk [vmem:[%s226 + $0xd0] sm:$0xff] %vm643, %v626
      %671 = vst.msk [vmem:[%s226 + $0xd8] sm:$0xff] %vm643, %v629
      %672 = vst.msk [vmem:[%s226 + $0xe0] sm:$0xff] %vm643, %v632
      %673 = vst.msk [vmem:[%s226 + $0xe8] sm:$0xff] %vm643, %v635
      %674 = vst.msk [vmem:[%s226 + $0xf0] sm:$0xff] %vm643, %v638
      %675 = vst.msk [vmem:[%s226 + $0xf8] sm:$0xff] %vm643, %v641
      %s676 = smul.u32 32, %s16
      %p677 = scmp.lt.s32.totalorder %s676, 63
      %s678 = scalar_select %p677, %s676, 63
      %s679 = smul.addr %s678, 8
      %s680 = scalar_lea.vmem %s5, %s679
      // Predicated region
      $region41: #{tpu_custom_call.1} parent=39 // pred_check
        %p681 = pneg %p144
      $region42: #{tpu_custom_call.1} parent=39 // pred_check_branch
        %683 = sbr.rel (%p681) target = $region44
      $region43: #{tpu_custom_call.1} parent=39 // pred_region
        %s684 = smul.u32 32, %s16
      $region44: #{tpu_custom_call.1} parent=39 // pred_fallthru
        _
    $region40: #{tpu_custom_call.1} parent=5 // pred_fallthru
      _
    %p685 = scmp.le.s32.totalorder 2, %s11
    // Predicated region
    $region45: #{tpu_custom_call.1} parent=5 // pred_check
      %p686 = pneg %p685
    $region46: #{tpu_custom_call.1} parent=5 // pred_check_branch
      %688 = sbr.rel (%p686) target = $region48
    $region47: #{tpu_custom_call.1} parent=5 // pred_region
      %s689 = ssub.s32 %s11, 2
      // Predicated region
      $region49: #{tpu_custom_call.1} parent=47 // pred_check
        %p690 = pneg %p150
      $region50: #{tpu_custom_call.1} parent=47 // pred_check_branch
        %692 = sbr.rel (%p690) target = $region52
      $region51: #{tpu_custom_call.1} parent=47 // pred_region
        %s693 = smul.u32 32, %s17
        %p694 = scmp.lt.s32.totalorder %s693, 63
        %s695 = scalar_select %p694, %s693, 63
        %s696 = smul.addr %s695, 8
        %s697 = scalar_lea.vmem %s5, %s696
      $region52: #{tpu_custom_call.1} parent=47 // pred_fallthru
        _
    $region48: #{tpu_custom_call.1} parent=5 // pred_fallthru
      _
  $region6: #{tpu_custom_call.1} parent=0 // loop_footer
    %s15 = sadd.s32 1, %s11
  $region7: #{tpu_custom_call.1} parent=0 // loop_footer_branch
    %10 = sbr.rel target = $region3
  $region8: #{tpu_custom_call.1} parent=0 // loop_exit
    _

</llo_original>
